<compile_context>
chip_gen: v7x
topology: tpu7x:2x2x1
jax: 0.10.0
libtpu: 0.0.40
codegen_flags: <defaults>
</compile_context>

<pallas_src>
import functools

import jax
import jax.numpy as jnp
from jax.experimental import pallas as pl
from jax.experimental.pallas import tpu as pltpu


def padder_linformer_kernel(x_ref, wqkv_ref, wo_ref, et_ref, ft_ref, o_ref, *,
                            scale, k_proj):
    bt, s, c = x_ref.shape            # (batch_tile, seq_len, C), f32
    cp = wo_ref.shape[0]              # lane-padded channel dim (multiple of 128)
    kp_dim = et_ref.shape[0]          # lane-padded Linformer low-rank dim

    # ---- fused Q/K/V projection: one bf16 MXU matmul, f32 accumulation ------
    xb = x_ref[...].astype(jnp.bfloat16).reshape(bt * s, c)
    qkv = jnp.dot(xb, wqkv_ref[...], preferred_element_type=jnp.float32)

    # Mask for padded low-rank columns (hoisted out of the batch loop).
    if kp_dim != k_proj:
        col = jax.lax.broadcasted_iota(jnp.int32, (s, kp_dim), 1)
        kp_mask = col < k_proj

    attn_rows = []
    for b in range(bt):               # static unroll over the batch tile
        r0 = b * s
        qb = qkv[r0:r0 + s, 0 * cp:1 * cp].astype(jnp.bfloat16)   # (s, cp)
        kb = qkv[r0:r0 + s, 1 * cp:2 * cp].astype(jnp.bfloat16)
        vb = qkv[r0:r0 + s, 2 * cp:3 * cp].astype(jnp.bfloat16)

        # ---- Linformer low-rank sequence projection (pad-free, 2D MXU) ------
        kproj = jnp.dot(et_ref[...], kb,
                        preferred_element_type=jnp.float32).astype(jnp.bfloat16)
        vproj = jnp.dot(ft_ref[...], vb,
                        preferred_element_type=jnp.float32).astype(jnp.bfloat16)

        # ---- scaled dot-product attention vs. low-rank keys (f32 softmax) ---
        scores = jax.lax.dot_general(
            qb, kproj, (((1,), (1,)), ((), ())),
            preferred_element_type=jnp.float32) * scale            # (s, kp_dim)
        if kp_dim != k_proj:
            scores = jnp.where(kp_mask, scores, jnp.float32(-1e30))
        scores = scores - jnp.max(scores, axis=-1, keepdims=True)
        p = jnp.exp(scores)
        p = p * pl.reciprocal(jnp.sum(p, axis=-1, keepdims=True), approx=True)

        attn_rows.append(jnp.dot(p.astype(jnp.bfloat16), vproj,
                                 preferred_element_type=jnp.float32))

    attn = attn_rows[0] if bt == 1 else jnp.concatenate(attn_rows, axis=0)

    # ---- output projection ---------------------------------------------------
    out = jnp.dot(attn.astype(jnp.bfloat16), wo_ref[...],
                  preferred_element_type=jnp.float32)
    o_ref[...] = out.reshape(bt, s, cp).astype(o_ref.dtype)


def _pick_batch_tile(batch, seq):
    """>=2 grid steps (v7x megacore / DMA pipelining) while keeping bt*seq big."""
    if batch < 2:
        return batch
    cap = max(1, min(batch // 2, pl.cdiv(256, seq)))
    for bt in range(cap, 0, -1):
        if batch % bt == 0:
            return bt
    return 1


def _const_spec(shape):
    """Grid-invariant operand: fetched once; single-buffered when supported."""
    idx = lambda b: (0,) * len(shape)
    try:
        return pl.BlockSpec(shape, idx, pipeline_mode=pl.Buffered(1))
    except Exception:  # pipeline_mode/Buffered unavailable -> default buffering
        return pl.BlockSpec(shape, idx)


def padder_forward(x, wq, wk, wv, wo, e, f, *, input_size, batch_tile=None):
    """Padder(Linformer).forward: pad seq to input_size, run net, un-pad."""
    B, S, C = x.shape
    assert S <= input_size, "Padder only pads up to net.input_size"

    # Pad-elimination (exact for bias-free projections): only the first S rows
    # of E/F touch non-zero data, padded query rows are discarded by the slice.
    k_proj = e.shape[1]
    Kp = pl.cdiv(k_proj, 128) * 128                       # lane-dense low-rank dim
    et_s = jnp.pad(e[:S, :].T, ((0, Kp - k_proj), (0, 0))).astype(jnp.bfloat16)
    ft_s = jnp.pad(f[:S, :].T, ((0, Kp - k_proj), (0, 0))).astype(jnp.bfloat16)

    # Lane-dense channel padding on weight *outputs* only (exact: padded
    # channels stay zero end-to-end). x itself is passed unpadded / un-cast.
    Cp = pl.cdiv(C, 128) * 128
    pad_c = Cp - C
    wqkv = jnp.concatenate(
        [jnp.pad(w, ((0, 0), (0, pad_c))) for w in (wq, wk, wv)],
        axis=1).astype(jnp.bfloat16)                      # (C, 3*Cp)
    wo_p = jnp.pad(wo, ((0, pad_c), (0, pad_c))).astype(jnp.bfloat16)  # (Cp, Cp)

    if batch_tile is None:
        batch_tile = _pick_batch_tile(B, S)
    assert B % batch_tile == 0
    grid = (B // batch_tile,)

    # Generation-aware VMEM budget (v7x 64 MiB physical vs 128 MiB on v5e/v6e).
    try:
        vmem_phys = pltpu.get_tpu_info().vmem_capacity_bytes
    except Exception:
        vmem_phys = 64 << 20
    vmem_limit = int(min(max(vmem_phys - (8 << 20), 32 << 20), 100 << 20))

    kernel = functools.partial(padder_linformer_kernel,
                               scale=1.0 / float(C) ** 0.5, k_proj=k_proj)

    out = pl.pallas_call(
        kernel,
        out_shape=jax.ShapeDtypeStruct((B, S, Cp), jnp.bfloat16),
        grid=grid,
        in_specs=[
            pl.BlockSpec((batch_tile, S, C), lambda b: (b, 0, 0)),
            _const_spec(wqkv.shape),
            _const_spec(wo_p.shape),
            _const_spec(et_s.shape),
            _const_spec(ft_s.shape),
        ],
        out_specs=pl.BlockSpec((batch_tile, S, Cp), lambda b: (b, 0, 0)),
        compiler_params=pltpu.CompilerParams(
            dimension_semantics=("parallel",),
            vmem_limit_bytes=vmem_limit),
    )(x, wqkv, wo_p, et_s, ft_s)

    # Un-pad channels (no-op when C % 128 == 0) and return f32 like the module.
    return out[:, :, :C].astype(jnp.float32)


def padder_forward_ref(x, wq, wk, wv, wo, e, f, *, input_size):
    """Pure-JAX f32 reference of the original semantics (pad -> attn -> unpad)."""
    B, S, C = x.shape
    pad = input_size - S
    x_pad = jnp.concatenate([x, jnp.zeros((B, pad, C), x.dtype)], axis=1)
    q = x_pad @ wq
    k = x_pad @ wk
    v = x_pad @ wv
    kp = jnp.einsum("nk,bnc->bkc", e, k)
    vp = jnp.einsum("nk,bnc->bkc", f, v)
    s = jnp.einsum("bnc,bkc->bnk", q, kp) / jnp.sqrt(jnp.float32(C))
    p = jax.nn.softmax(s, axis=-1)
    out = jnp.einsum("bnk,bkc->bnc", p, vp) @ wo
    return out[:, :S]


if __name__ == "__main__":
    key = jax.random.PRNGKey(0)
    B, S, C = 2, 8, 32          # batch, seq_len (unpadded), channels
    INPUT_SIZE = 16             # net.input_size (Padder pads seq up to this)
    K_PROJ = 8                  # Linformer low-rank projection dim

    k_x, k_q, k_k, k_v, k_o, k_e, k_f = jax.random.split(key, 7)
    x = jax.random.normal(k_x, (B, S, C), dtype=jnp.float32)
    wq = jax.random.normal(k_q, (C, C), dtype=jnp.float32) / jnp.sqrt(C)
    wk = jax.random.normal(k_k, (C, C), dtype=jnp.float32) / jnp.sqrt(C)
    wv = jax.random.normal(k_v, (C, C), dtype=jnp.float32) / jnp.sqrt(C)
    wo = jax.random.normal(k_o, (C, C), dtype=jnp.float32) / jnp.sqrt(C)
    e = jax.random.normal(k_e, (INPUT_SIZE, K_PROJ), dtype=jnp.float32) / jnp.sqrt(INPUT_SIZE)
    f = jax.random.normal(k_f, (INPUT_SIZE, K_PROJ), dtype=jnp.float32) / jnp.sqrt(INPUT_SIZE)

    out = padder_forward(x, wq, wk, wv, wo, e, f, input_size=INPUT_SIZE)
    out = jax.block_until_ready(out)

    ref = padder_forward_ref(x, wq, wk, wv, wo, e, f, input_size=INPUT_SIZE)
    assert out.shape == (B, S, C)
    # Kernel feeds the MXU bf16 operands (f32 accumulation) and writes bf16,
    # so compare against the pure-f32 reference at bf16-level tolerance.
    assert jnp.allclose(out, ref, atol=5e-2, rtol=5e-2)

    print("KERNEL_OK")
</pallas_src>

<mosaic_0001>
module attributes {stable_mosaic.version = 11 : i64} {
  func.func @padder_linformer_kernel(%arg0: i32, %arg1: memref<1x8x32xf32, #tpu.memory_space<vmem>>, %arg2: memref<32x384xbf16, #tpu.memory_space<vmem>>, %arg3: memref<128x128xbf16, #tpu.memory_space<vmem>>, %arg4: memref<128x8xbf16, #tpu.memory_space<vmem>>, %arg5: memref<128x8xbf16, #tpu.memory_space<vmem>>, %arg6: memref<1x8x128xbf16, #tpu.memory_space<vmem>>) attributes {dimension_semantics = [#tpu.dimension_semantics<parallel>], iteration_bounds = array<i64: 2>, scalar_prefetch = 0 : i64, scratch_operands = 0 : i64, tpu.core_type = #tpu.core_type<tc>, window_params = [{transform_indices = @transform_0, window_bounds = array<i64: 1, 8, 32>}, {pipeline_mode = #tpu.pipeline_mode<synchronous>, transform_indices = @transform_1, window_bounds = array<i64: 32, 384>}, {pipeline_mode = #tpu.pipeline_mode<synchronous>, transform_indices = @transform_2, window_bounds = array<i64: 128, 128>}, {pipeline_mode = #tpu.pipeline_mode<synchronous>, transform_indices = @transform_3, window_bounds = array<i64: 128, 8>}, {pipeline_mode = #tpu.pipeline_mode<synchronous>, transform_indices = @transform_4, window_bounds = array<i64: 128, 8>}, {transform_indices = @transform_5, window_bounds = array<i64: 1, 8, 128>}]} {
    %c0 = arith.constant 0 : index
    %c0_0 = arith.constant 0 : index
    %c0_1 = arith.constant 0 : index
    %0 = vector.load %arg1[%c0, %c0_0, %c0_1] : memref<1x8x32xf32, #tpu.memory_space<vmem>>, vector<1x8x32xf32>
    %1 = arith.truncf %0 : vector<1x8x32xf32> to vector<1x8x32xbf16>
    %2 = vector.shape_cast %1 : vector<1x8x32xbf16> to vector<8x32xbf16>
    %c0_2 = arith.constant 0 : index
    %c0_3 = arith.constant 0 : index
    %3 = vector.load %arg2[%c0_2, %c0_3] : memref<32x384xbf16, #tpu.memory_space<vmem>>, vector<32x384xbf16>
    %cst = arith.constant dense<0.000000e+00> : vector<8x384xf32>
    %4 = tpu.matmul %2, %3, %cst {dimension_numbers = #tpu.dot_dimension_numbers<[1], [0], [0], [1], [0, 0, 1, 1], [], []>} : vector<8x32xbf16>, vector<32x384xbf16>, vector<8x384xf32> -> vector<8x384xf32>
    %5 = tpu.iota {dimensions = array<i32: 1>} : vector<8x128xi32>
    %c8_i32 = arith.constant 8 : i32
    %6 = vector.broadcast %c8_i32 : i32 to vector<8x128xi32>
    %7 = arith.cmpi slt, %5, %6 : vector<8x128xi32>
    %8 = vector.extract_strided_slice %4 {offsets = [0, 0], sizes = [8, 128], strides = [1, 1]} : vector<8x384xf32> to vector<8x128xf32>
    %9 = arith.truncf %8 : vector<8x128xf32> to vector<8x128xbf16>
    %10 = vector.extract_strided_slice %4 {offsets = [0, 128], sizes = [8, 128], strides = [1, 1]} : vector<8x384xf32> to vector<8x128xf32>
    %11 = arith.truncf %10 : vector<8x128xf32> to vector<8x128xbf16>
    %12 = vector.extract_strided_slice %4 {offsets = [0, 256], sizes = [8, 128], strides = [1, 1]} : vector<8x384xf32> to vector<8x128xf32>
    %13 = arith.truncf %12 : vector<8x128xf32> to vector<8x128xbf16>
    %c0_4 = arith.constant 0 : index
    %c0_5 = arith.constant 0 : index
    %14 = vector.load %arg4[%c0_4, %c0_5] : memref<128x8xbf16, #tpu.memory_space<vmem>>, vector<128x8xbf16>
    %cst_6 = arith.constant dense<0.000000e+00> : vector<128x128xf32>
    %15 = tpu.matmul %14, %11, %cst_6 {dimension_numbers = #tpu.dot_dimension_numbers<[1], [0], [0], [1], [0, 0, 1, 1], [], []>} : vector<128x8xbf16>, vector<8x128xbf16>, vector<128x128xf32> -> vector<128x128xf32>
    %16 = arith.truncf %15 : vector<128x128xf32> to vector<128x128xbf16>
    %c0_7 = arith.constant 0 : index
    %c0_8 = arith.constant 0 : index
    %17 = vector.load %arg5[%c0_7, %c0_8] : memref<128x8xbf16, #tpu.memory_space<vmem>>, vector<128x8xbf16>
    %cst_9 = arith.constant dense<0.000000e+00> : vector<128x128xf32>
    %18 = tpu.matmul %17, %13, %cst_9 {dimension_numbers = #tpu.dot_dimension_numbers<[1], [0], [0], [1], [0, 0, 1, 1], [], []>} : vector<128x8xbf16>, vector<8x128xbf16>, vector<128x128xf32> -> vector<128x128xf32>
    %19 = arith.truncf %18 : vector<128x128xf32> to vector<128x128xbf16>
    %cst_10 = arith.constant dense<0.000000e+00> : vector<8x128xf32>
    %20 = tpu.matmul %9, %16, %cst_10 {dimension_numbers = #tpu.dot_dimension_numbers<[1], [1], [0], [0], [0, 0, 1, 0], [], []>} : vector<8x128xbf16>, vector<128x128xbf16>, vector<8x128xf32> -> vector<8x128xf32>
    %cst_11 = arith.constant 0.176776692 : f32
    %21 = vector.broadcast %cst_11 : f32 to vector<8x128xf32>
    %22 = arith.mulf %20, %21 : vector<8x128xf32>
    %cst_12 = arith.constant -1.000000e+30 : f32
    %23 = vector.broadcast %cst_12 : f32 to vector<8x128xf32>
    %24 = arith.select %7, %22, %23 : vector<8x128xi1>, vector<8x128xf32>
    %cst_13 = arith.constant dense<0xFF800000> : vector<8xf32>
    %25 = vector.multi_reduction <maximumf>, %24, %cst_13 [1] : vector<8x128xf32> to vector<8xf32>
    %26 = vector.shape_cast %25 : vector<8xf32> to vector<8x1xf32>
    %27 = vector.broadcast %26 : vector<8x1xf32> to vector<8x128xf32>
    %28 = arith.subf %24, %27 : vector<8x128xf32>
    %29 = math.exp %28 : vector<8x128xf32>
    %cst_14 = arith.constant dense<0.000000e+00> : vector<8xf32>
    %30 = vector.multi_reduction <add>, %29, %cst_14 [1] : vector<8x128xf32> to vector<8xf32>
    %31 = vector.shape_cast %30 : vector<8xf32> to vector<8x1xf32>
    %32 = tpu.reciprocal %31 {approx = true} : vector<8x1xf32> -> vector<8x1xf32>
    %33 = vector.broadcast %32 : vector<8x1xf32> to vector<8x128xf32>
    %34 = arith.mulf %29, %33 : vector<8x128xf32>
    %35 = arith.truncf %34 : vector<8x128xf32> to vector<8x128xbf16>
    %cst_15 = arith.constant dense<0.000000e+00> : vector<8x128xf32>
    %36 = tpu.matmul %35, %19, %cst_15 {dimension_numbers = #tpu.dot_dimension_numbers<[1], [0], [0], [1], [0, 0, 1, 1], [], []>} : vector<8x128xbf16>, vector<128x128xbf16>, vector<8x128xf32> -> vector<8x128xf32>
    %37 = arith.truncf %36 : vector<8x128xf32> to vector<8x128xbf16>
    %c0_16 = arith.constant 0 : index
    %c0_17 = arith.constant 0 : index
    %38 = vector.load %arg3[%c0_16, %c0_17] : memref<128x128xbf16, #tpu.memory_space<vmem>>, vector<128x128xbf16>
    %cst_18 = arith.constant dense<0.000000e+00> : vector<8x128xf32>
    %39 = tpu.matmul %37, %38, %cst_18 {dimension_numbers = #tpu.dot_dimension_numbers<[1], [0], [0], [1], [0, 0, 1, 1], [], []>} : vector<8x128xbf16>, vector<128x128xbf16>, vector<8x128xf32> -> vector<8x128xf32>
    %40 = vector.shape_cast %39 : vector<8x128xf32> to vector<1x8x128xf32>
    %41 = arith.truncf %40 : vector<1x8x128xf32> to vector<1x8x128xbf16>
    %c0_19 = arith.constant 0 : index
    %c0_20 = arith.constant 0 : index
    %c0_21 = arith.constant 0 : index
    %42 = vector.load %arg6[%c0_19, %c0_20, %c0_21] : memref<1x8x128xbf16, #tpu.memory_space<vmem>>, vector<1x8x128xbf16>
    tpu.vector_store %arg6[%c0_19, %c0_20, %c0_21], %41 {strides = array<i32>} : memref<1x8x128xbf16, #tpu.memory_space<vmem>>, vector<1x8x128xbf16>,
    return
  }
  func.func @transform_0(%arg0: i32) -> (i32, i32, i32) {
    %c0_i32 = arith.constant 0 : i32
    %c0_i32_0 = arith.constant 0 : i32
    %c0_i32_1 = arith.constant 0 : i32
    return %arg0, %c0_i32, %c0_i32_0 : i32, i32, i32
  }
  func.func @transform_1(%arg0: i32) -> (i32, i32) {
    %c0_i32 = arith.constant 0 : i32
    %c0_i32_0 = arith.constant 0 : i32
    %c0_i32_1 = arith.constant 0 : i32
    return %c0_i32, %c0_i32_0 : i32, i32
  }
  func.func @transform_2(%arg0: i32) -> (i32, i32) {
    %c0_i32 = arith.constant 0 : i32
    %c0_i32_0 = arith.constant 0 : i32
    %c0_i32_1 = arith.constant 0 : i32
    return %c0_i32, %c0_i32_0 : i32, i32
  }
  func.func @transform_3(%arg0: i32) -> (i32, i32) {
    %c0_i32 = arith.constant 0 : i32
    %c0_i32_0 = arith.constant 0 : i32
    %c0_i32_1 = arith.constant 0 : i32
    return %c0_i32, %c0_i32_0 : i32, i32
  }
  func.func @transform_4(%arg0: i32) -> (i32, i32) {
    %c0_i32 = arith.constant 0 : i32
    %c0_i32_0 = arith.constant 0 : i32
    %c0_i32_1 = arith.constant 0 : i32
    return %c0_i32, %c0_i32_0 : i32, i32
  }
  func.func @transform_5(%arg0: i32) -> (i32, i32, i32) {
    %c0_i32 = arith.constant 0 : i32
    %c0_i32_0 = arith.constant 0 : i32
    %c0_i32_1 = arith.constant 0 : i32
    return %arg0, %c0_i32, %c0_i32_0 : i32, i32, i32
  }
}

</mosaic_0001>

<llo_original>
// kernel: tpu_custom_call.1
$region0: #{tpu_custom_call.1}
  #allocation0 [shape = 'u32[]', space=smem, size = 0x4, offset = 0x4, fixed_abs, tag = 'smem constant byte address 0x4 - core index']
  #allocation1 [shape = 'u32[144,128]{1,0:T(1,128)}', space=vmem, size = 0x12000, scoped, tag = 'internal scratch']
  %s0 = inlined_call_operand.vmem [shape: f32[2,8,32], index: 0, kind: input, shape index: {}]
  %s1 = inlined_call_operand.vmem [shape: bf16[32,384], index: 1, kind: input, shape index: {}]
  %s2 = inlined_call_operand.vmem [shape: bf16[128,128], index: 2, kind: input, shape index: {}]
  %s3 = inlined_call_operand.vmem [shape: bf16[128,8], index: 3, kind: input, shape index: {}]
  %s4 = inlined_call_operand.vmem [shape: bf16[128,8], index: 4, kind: input, shape index: {}]
  %s5 = inlined_call_operand.hbm [shape: bf16[2,8,128], index: 5, kind: output, shape index: {}]
  %s6 = sld [smem:[#allocation0]]
  $region53: #{tpu_custom_call.1} parent=0
    _
  %s8 = ssub.s32 1, %s6
  %s9 = scalar_select 0, %s8, %s6
  $region1: #{tpu_custom_call.1} parent=0
    #allocation2 [shape = 'u8[4096]{0}', space=vmem, size = 0x1000, scoped, tag = 'output window, operand 0']
    #allocation3 [shape = 's32[2]{0}', space=sflag, size = 0x8, scoped, tag = 'scoped memory for tpu_custom_call.1']
    %10 = vsyncpa [#allocation3], 0
    %s11 = scalar_lea.sflag [#allocation3], 1
    %12 = vsyncpa %s11, 0
    loop: start=0, step=1, limit=4
    $region2: #{tpu_custom_call.1} parent=1 // loop_pre_header
      _
    $region3: #{tpu_custom_call.1} parent=1 // loop_header
      %s14 = sphi 0, %s18
      %p15 = scmp.ge.s32.totalorder %s14, 4
      %s24 = sphi 0, %s26
      %s27 = sphi 0, %s24
      %s28 = sphi 0, %s27
      %s44 = sphi 0, %s28
      %s48 = sphi 0, %s48
      %s50 = sphi 0, %s48
      %s51 = sphi 0, %s50
      %s65 = sphi 0, %s51
      %s69 = sphi 0, %s69
      %s71 = sphi 0, %s69
      %s72 = sphi 0, %s71
      %s86 = sphi 0, %s72
      %s90 = sphi 0, %s90
      %s92 = sphi 0, %s90
      %s93 = sphi 0, %s92
      %s107 = sphi 0, %s93
      %s111 = sphi 0, %s111
      %s113 = sphi 0, %s111
      %s114 = sphi 0, %s113
      %s128 = sphi 0, %s114
      %s134 = sphi 0, %s136
      %s137 = sphi 0, %s134
      %s138 = sphi 0, %s137
      %s154 = sphi 0, %s138
    $region4: #{tpu_custom_call.1} parent=1 // loop_header_branch
      %17 = sbr.rel (%p15) target = $region8
    $region5: #{tpu_custom_call.1} parent=1 // loop_body
      %s19 = ssub.s32 %s14, 1
      %s20 = ssub.s32 %s14, 2
      %s21 = sadd.s32 %s14, 1
      %s22 = ssub.s32 %s14, %s21
      %p23 = scmp.eq.s32.totalorder %s22, 0
      %s25 = sadd.s32 %s24, 1
      %s26 = scalar_select %p23, %s24, %s25
      %p29 = pneg %p23
      %p30 = scmp.eq.s32.totalorder %s14, 1
      %p31 = por %p29, %p30
      %p32 = scmp.ne.s32.totalorder %s24, %s27
      %p33 = scmp.eq.s32.totalorder %s14, 0
      %p34 = por %p32, %p33
      %p35 = scmp.ne.s32.totalorder %s24, %s27
      %p36 = scmp.eq.s32.totalorder %s19, 1
      %p37 = por %p35, %p36
      %p38 = scmp.ne.s32.totalorder %s27, %s28
      %p39 = scmp.eq.s32.totalorder %s19, 0
      %p40 = por %p38, %p39
      %p41 = scmp.ne.s32.totalorder %s27, %s28
      %p42 = scmp.eq.s32.totalorder %s20, 1
      %p43 = por %p41, %p42
      %p45 = scmp.ne.s32.totalorder %s28, %s44
      %p46 = scmp.eq.s32.totalorder %s20, 0
      %p47 = por %p45, %p46
      %s49 = sadd.s32 %s48, 1
      %p52 = scmp.eq.s32.totalorder %s14, 1
      %p53 = scmp.ne.s32.totalorder %s48, %s50
      %p54 = scmp.eq.s32.totalorder %s14, 0
      %p55 = por %p53, %p54
      %p56 = scmp.ne.s32.totalorder %s48, %s50
      %p57 = scmp.eq.s32.totalorder %s19, 1
      %p58 = por %p56, %p57
      %p59 = scmp.ne.s32.totalorder %s50, %s51
      %p60 = scmp.eq.s32.totalorder %s19, 0
      %p61 = por %p59, %p60
      %p62 = scmp.ne.s32.totalorder %s50, %s51
      %p63 = scmp.eq.s32.totalorder %s20, 1
      %p64 = por %p62, %p63
      %p66 = scmp.ne.s32.totalorder %s51, %s65
      %p67 = scmp.eq.s32.totalorder %s20, 0
      %p68 = por %p66, %p67
      %s70 = sadd.s32 %s69, 1
      %p73 = scmp.eq.s32.totalorder %s14, 1
      %p74 = scmp.ne.s32.totalorder %s69, %s71
      %p75 = scmp.eq.s32.totalorder %s14, 0
      %p76 = por %p74, %p75
      %p77 = scmp.ne.s32.totalorder %s69, %s71
      %p78 = scmp.eq.s32.totalorder %s19, 1
      %p79 = por %p77, %p78
      %p80 = scmp.ne.s32.totalorder %s71, %s72
      %p81 = scmp.eq.s32.totalorder %s19, 0
      %p82 = por %p80, %p81
      %p83 = scmp.ne.s32.totalorder %s71, %s72
      %p84 = scmp.eq.s32.totalorder %s20, 1
      %p85 = por %p83, %p84
      %p87 = scmp.ne.s32.totalorder %s72, %s86
      %p88 = scmp.eq.s32.totalorder %s20, 0
      %p89 = por %p87, %p88
      %s91 = sadd.s32 %s90, 1
      %p94 = scmp.eq.s32.totalorder %s14, 1
      %p95 = scmp.ne.s32.totalorder %s90, %s92
      %p96 = scmp.eq.s32.totalorder %s14, 0
      %p97 = por %p95, %p96
      %p98 = scmp.ne.s32.totalorder %s90, %s92
      %p99 = scmp.eq.s32.totalorder %s19, 1
      %p100 = por %p98, %p99
      %p101 = scmp.ne.s32.totalorder %s92, %s93
      %p102 = scmp.eq.s32.totalorder %s19, 0
      %p103 = por %p101, %p102
      %p104 = scmp.ne.s32.totalorder %s92, %s93
      %p105 = scmp.eq.s32.totalorder %s20, 1
      %p106 = por %p104, %p105
      %p108 = scmp.ne.s32.totalorder %s93, %s107
      %p109 = scmp.eq.s32.totalorder %s20, 0
      %p110 = por %p108, %p109
      %s112 = sadd.s32 %s111, 1
      %p115 = scmp.eq.s32.totalorder %s14, 1
      %p116 = scmp.ne.s32.totalorder %s111, %s113
      %p117 = scmp.eq.s32.totalorder %s14, 0
      %p118 = por %p116, %p117
      %p119 = scmp.ne.s32.totalorder %s111, %s113
      %p120 = scmp.eq.s32.totalorder %s19, 1
      %p121 = por %p119, %p120
      %p122 = scmp.ne.s32.totalorder %s113, %s114
      %p123 = scmp.eq.s32.totalorder %s19, 0
      %p124 = por %p122, %p123
      %p125 = scmp.ne.s32.totalorder %s113, %s114
      %p126 = scmp.eq.s32.totalorder %s20, 1
      %p127 = por %p125, %p126
      %p129 = scmp.ne.s32.totalorder %s114, %s128
      %p130 = scmp.eq.s32.totalorder %s20, 0
      %p131 = por %p129, %p130
      %s132 = ssub.s32 %s14, %s21
      %p133 = scmp.eq.s32.totalorder %s132, 0
      %s135 = sadd.s32 %s134, 1
      %s136 = scalar_select %p133, %s134, %s135
      %p139 = pneg %p133
      %p140 = scmp.eq.s32.totalorder %s14, 1
      %p141 = por %p139, %p140
      %p142 = scmp.ne.s32.totalorder %s134, %s137
      %p143 = scmp.eq.s32.totalorder %s14, 0
      %p144 = por %p142, %p143
      %p145 = scmp.ne.s32.totalorder %s134, %s137
      %p146 = scmp.eq.s32.totalorder %s19, 1
      %p147 = por %p145, %p146
      %p148 = scmp.ne.s32.totalorder %s137, %s138
      %p149 = scmp.eq.s32.totalorder %s19, 0
      %p150 = por %p148, %p149
      %p151 = scmp.ne.s32.totalorder %s137, %s138
      %p152 = scmp.eq.s32.totalorder %s20, 1
      %p153 = por %p151, %p152
      %p155 = scmp.ne.s32.totalorder %s138, %s154
      %p156 = scmp.eq.s32.totalorder %s20, 0
      %p157 = por %p155, %p156
      %p158 = scmp.le.s32.totalorder 1, %s14
      %p159 = scmp.lt.s32.totalorder %s14, 3
      %p160 = pnand %p158, %p159
      %p161 = pneg %p160
      // Predicated region
      $region9: #{tpu_custom_call.1} parent=5 // pred_check
        _
      $region10: #{tpu_custom_call.1} parent=5 // pred_check_branch
        %163 = sbr.rel (%p160) target = $region12
      $region11: #{tpu_custom_call.1} parent=5 // pred_region
        %s164 = ssub.s32 %s14, 1
        // Predicated region
        $region13: #{tpu_custom_call.1} parent=11 // pred_check
          %p165 = pneg %p61
        $region14: #{tpu_custom_call.1} parent=11 // pred_check_branch
          %167 = sbr.rel (%p165) target = $region16
        $region15: #{tpu_custom_call.1} parent=11 // pred_region
          _
        $region16: #{tpu_custom_call.1} parent=11 // pred_fallthru
          _
        // Predicated region
        $region17: #{tpu_custom_call.1} parent=11 // pred_check
          %p168 = pneg %p82
        $region18: #{tpu_custom_call.1} parent=11 // pred_check_branch
          %170 = sbr.rel (%p168) target = $region20
        $region19: #{tpu_custom_call.1} parent=11 // pred_region
          _
        $region20: #{tpu_custom_call.1} parent=11 // pred_fallthru
          _
        // Predicated region
        $region21: #{tpu_custom_call.1} parent=11 // pred_check
          %p171 = pneg %p103
        $region22: #{tpu_custom_call.1} parent=11 // pred_check_branch
          %173 = sbr.rel (%p171) target = $region24
        $region23: #{tpu_custom_call.1} parent=11 // pred_region
          _
        $region24: #{tpu_custom_call.1} parent=11 // pred_fallthru
          _
        // Predicated region
        $region25: #{tpu_custom_call.1} parent=11 // pred_check
          %p174 = pneg %p124
        $region26: #{tpu_custom_call.1} parent=11 // pred_check_branch
          %176 = sbr.rel (%p174) target = $region28
        $region27: #{tpu_custom_call.1} parent=11 // pred_region
          _
        $region28: #{tpu_custom_call.1} parent=11 // pred_fallthru
          _
      $region12: #{tpu_custom_call.1} parent=5 // pred_fallthru
        _
      %p177 = scmp.lt.s32.totalorder %s14, 2
      // Predicated region
      $region29: #{tpu_custom_call.1} parent=5 // pred_check
        %p178 = pneg %p177
      $region30: #{tpu_custom_call.1} parent=5 // pred_check_branch
        %180 = sbr.rel (%p178) target = $region32
      $region31: #{tpu_custom_call.1} parent=5 // pred_region
        // Predicated region
        $region33: #{tpu_custom_call.1} parent=31 // pred_check
          %p181 = pneg %p34
        $region34: #{tpu_custom_call.1} parent=31 // pred_check_branch
          %183 = sbr.rel (%p181) target = $region36
        $region35: #{tpu_custom_call.1} parent=31 // pred_region
          %p184 = scmp.lt.s32.totalorder %s14, 1
          %s185 = scalar_select %p184, %s14, 1
          %s186 = smul.addr %s185, 8
          %s187 = scalar_lea.vmem %s0, %s186
        $region36: #{tpu_custom_call.1} parent=31 // pred_fallthru
          _
      $region32: #{tpu_custom_call.1} parent=5 // pred_fallthru
        _
      %p188 = scmp.le.s32.totalorder 1, %s14
      %p189 = scmp.lt.s32.totalorder %s14, 3
      %p190 = pnand %p188, %p189
      %p191 = pneg %p190
      // Predicated region
      $region37: #{tpu_custom_call.1} parent=5 // pred_check
        _
      $region38: #{tpu_custom_call.1} parent=5 // pred_check_branch
        %193 = sbr.rel (%p190) target = $region40
      $region39: #{tpu_custom_call.1} parent=5 // pred_region
        %s194 = ssub.s32 %s14, 1
        %p195 = scmp.lt.s32.totalorder %s19, 1
        %s196 = scalar_select %p195, %s19, 1
        %s197 = smul.addr %s196, 8
        %s198 = scalar_lea.vmem %s0, %s197
        %p199 = pneg %p40
        %p200 = pneg %p37
        %p201 = pneg %p61
        %p202 = pneg %p58
        %p203 = pneg %p82
        %p204 = pneg %p79
        %p205 = pneg %p103
        %p206 = pneg %p100
        %p207 = pneg %p124
        %p208 = pneg %p121
        %p209 = pneg %p150
        %p210 = pneg %p147
        %s211 = sand.u32 %s137, 1
        %s212 = scalar_lea.sflag [#allocation3], %s211
        %s213 = sand.u32 %s137, 1
        %s214 = smul.addr %s213, 4
        %s215 = scalar_lea.vmem [#allocation2], %s214
        %p216 = scmp.lt.s32.totalorder %s19, 1
        %s217 = scalar_select %p216, %s19, 1
        %s218 = smul.addr %s217, 8
        %s219 = scalar_lea.vmem %s0, %s218
        %v221 = vld [vmem:[%s219] sm:$0xff]
        %v222 = vpack.c.bf16 %v221, %v221
        %v223 = vld [vmem:[%s1] sm:$0xff]
        %v224 = vld [vmem:[%s1 + $0x8] sm:$0xf]
        %v225 = vld [vmem:[%s1 + $0xc] sm:$0xff]
        %v226 = vld [vmem:[%s1 + $0x14] sm:$0xf]
        %v227 = vld [vmem:[%s1 + $0x18] sm:$0xff]
        %v228 = vld [vmem:[%s1 + $0x20] sm:$0xf]
        %v229 = vld [vmem:[%s1 + $0x24] sm:$0xff]
        %v230 = vld [vmem:[%s1 + $0x2c] sm:$0xf]
        %v239 = vunpack.c.l.b16 %v223
        %v240 = vunpack.c.h.b16 %v223
        %v241 = vunpack.c.l.b16 %v224
        %v242 = vunpack.c.l.b16 %v225
        %v243 = vunpack.c.h.b16 %v225
        %v244 = vunpack.c.l.b16 %v226
        %v245 = vunpack.c.l.b16 %v227
        %v246 = vunpack.c.h.b16 %v227
        %v247 = vunpack.c.l.b16 %v228
        %v248 = vunpack.c.l.b16 %v229
        %v249 = vunpack.c.h.b16 %v229
        %v250 = vunpack.c.l.b16 %v230
        %v251 = vpack.c.b16 %v242, %v239
        %v252 = vpack.c.b16 %v243, %v240
        %v253 = vpack.c.b16 %v244, %v241
        %v254 = vpack.c.b16 %v248, %v245
        %v255 = vpack.c.b16 %v249, %v246
        %v256 = vpack.c.b16 %v250, %v247
        %vm263 = vcmask 261120
        %v265 = vsel %vm263, %v222, 0
        %267 = vmatprep.subr.bf16.mxu0 %v252
        %268 = vmatpush1.bf16.msra.mxu0 %v251
        %269 = vmatprep.subr.bf16.mxu0 %v255
        %270 = vmatpush1.bf16.msra.mxu0 %v254
        %271 = vmatprep.subr.bf16.mxu0 0
        %272 = vmatpush1.bf16.msra.mxu0 0
        %273 = vmatprep.subr.bf16.mxu0 0
        %274 = vmatpush1.bf16.msra.mxu0 0
        %275 = vmatprep.subr.bf16.mxu0 0
        %276 = vmatpush1.bf16.msra.mxu0 0
        %277 = vmatprep.subr.bf16.mxu0 0
        %278 = vmatpush1.bf16.msra.mxu0 0
        %279 = vmatprep.subr.bf16.mxu0 0
        %280 = vmatpush1.bf16.msra.mxu0 0
        %281 = vmatprep.subr.bf16.mxu0 0
        %282 = vmatpush1.bf16.msra.mxu0 0
        %283 = vmatprep.subr.bf16.mxu0 0
        %284 = vmatpush1.bf16.msra.mxu0 0
        %285 = vmatprep.subr.bf16.mxu0 0
        %286 = vmatpush1.bf16.msra.mxu0 0
        %287 = vmatprep.subr.bf16.mxu0 0
        %288 = vmatpush1.bf16.msra.mxu0 0
        %289 = vmatprep.subr.bf16.mxu0 0
        %290 = vmatpush1.bf16.msra.mxu0 0
        %291 = vmatprep.subr.bf16.mxu0 0
        %292 = vmatpush1.bf16.msra.mxu0 0
        %293 = vmatprep.subr.bf16.mxu0 0
        %294 = vmatpush1.bf16.msra.mxu0 0
        %295 = vmatprep.subr.bf16.mxu0 0
        %296 = vmatpush1.bf16.msra.mxu0 0
        %297 = vmatprep.subr.bf16.mxu0 0
        %298 = vmatpush1.bf16.msra.mxu0 0
        %299 = vmatprep.mubr.bf16.mxu0 0
        %300 = vmatmul.mubr.bf16.gmra.mrb[0].mxu0 %v265
        %v301 = vpop.f32.mrb[0].mxu0
        %v302 = vadd.f32 0.0, %v301
        %v303 = vpop.f32.mrb[0].mxu0
        %v304 = vadd.f32 0.0, %v303
        %v305 = vpop.f32.mrb[0].mxu0
        %v306 = vpop.f32.mrb[0].mxu0
        %307 = vdwg.mxu0
        %308 = vmatprep.subr.bf16.mxu0 0
        %309 = vmatpush1.bf16.msra.mxu0 %v253
        %310 = vmatprep.subr.bf16.mxu0 0
        %311 = vmatpush1.bf16.msra.mxu0 %v256
        %312 = vmatprep.subr.bf16.mxu0 0
        %313 = vmatpush1.bf16.msra.mxu0 0
        %314 = vmatprep.subr.bf16.mxu0 0
        %315 = vmatpush1.bf16.msra.mxu0 0
        %316 = vmatprep.subr.bf16.mxu0 0
        %317 = vmatpush1.bf16.msra.mxu0 0
        %318 = vmatprep.subr.bf16.mxu0 0
        %319 = vmatpush1.bf16.msra.mxu0 0
        %320 = vmatprep.subr.bf16.mxu0 0
        %321 = vmatpush1.bf16.msra.mxu0 0
        %322 = vmatprep.subr.bf16.mxu0 0
        %323 = vmatpush1.bf16.msra.mxu0 0
        %324 = vmatprep.subr.bf16.mxu0 0
        %325 = vmatpush1.bf16.msra.mxu0 0
        %326 = vmatprep.subr.bf16.mxu0 0
        %327 = vmatpush1.bf16.msra.mxu0 0
        %328 = vmatprep.subr.bf16.mxu0 0
        %329 = vmatpush1.bf16.msra.mxu0 0
        %330 = vmatprep.subr.bf16.mxu0 0
        %331 = vmatpush1.bf16.msra.mxu0 0
        %332 = vmatprep.subr.bf16.mxu0 0
        %333 = vmatpush1.bf16.msra.mxu0 0
        %334 = vmatprep.subr.bf16.mxu0 0
        %335 = vmatpush1.bf16.msra.mxu0 0
        %336 = vmatprep.subr.bf16.mxu0 0
        %337 = vmatpush1.bf16.msra.mxu0 0
        %338 = vmatprep.subr.bf16.mxu0 0
        %339 = vmatpush1.bf16.msra.mxu0 0
        %340 = vmatprep.mubr.bf16.mxu0 0
        %341 = vmatmul.mubr.bf16.gmra.mrb[0].mxu0 %v265
        %v342 = vpop.f32.mrb[0].mxu0
        %v343 = vadd.f32 0.0, %v342
        %v344 = vpop.f32.mrb[0].mxu0
        %v345 = vpop.f32.mrb[0].mxu0
        %v346 = vpop.f32.mrb[0].mxu0
        %347 = vdwg.mxu0
        %v348 = vlaneseq
        %v349 = vand.u32 %v348, 127
        %vm350 = vcmp.lt.s32.totalorder %v349, 8
        %v351 = vpack.c.bf16 %v302, %v302
        %v352 = vpack.c.bf16 %v304, %v304
        %v353 = vpack.c.bf16 %v343, %v343
        %v354 = vld [vmem:[%s3] sm:$0xf]
        %v355 = vld [vmem:[%s3 + $0x4] sm:$0xf]
        %v356 = vld [vmem:[%s3 + $0x8] sm:$0xf]
        %v357 = vld [vmem:[%s3 + $0xc] sm:$0xf]
        %v358 = vld [vmem:[%s3 + $0x10] sm:$0xf]
        %v359 = vld [vmem:[%s3 + $0x14] sm:$0xf]
        %v360 = vld [vmem:[%s3 + $0x18] sm:$0xf]
        %v361 = vld [vmem:[%s3 + $0x1c] sm:$0xf]
        %v362 = vld [vmem:[%s3 + $0x20] sm:$0xf]
        %v363 = vld [vmem:[%s3 + $0x24] sm:$0xf]
        %v364 = vld [vmem:[%s3 + $0x28] sm:$0xf]
        %v365 = vld [vmem:[%s3 + $0x2c] sm:$0xf]
        %v366 = vld [vmem:[%s3 + $0x30] sm:$0xf]
        %v367 = vld [vmem:[%s3 + $0x34] sm:$0xf]
        %v368 = vld [vmem:[%s3 + $0x38] sm:$0xf]
        %v369 = vld [vmem:[%s3 + $0x3c] sm:$0xf]
        %v386 = vunpack.c.l.b16 %v354
        %v387 = vunpack.c.l.b16 %v355
        %v388 = vunpack.c.l.b16 %v356
        %v389 = vunpack.c.l.b16 %v357
        %v390 = vunpack.c.l.b16 %v358
        %v391 = vunpack.c.l.b16 %v359
        %v392 = vunpack.c.l.b16 %v360
        %v393 = vunpack.c.l.b16 %v361
        %v394 = vunpack.c.l.b16 %v362
        %v395 = vunpack.c.l.b16 %v363
        %v396 = vunpack.c.l.b16 %v364
        %v397 = vunpack.c.l.b16 %v365
        %v398 = vunpack.c.l.b16 %v366
        %v399 = vunpack.c.l.b16 %v367
        %v400 = vunpack.c.l.b16 %v368
        %v401 = vunpack.c.l.b16 %v369
        %v402 = vpack.c.b16 %v387, %v386
        %v403 = vpack.c.b16 %v389, %v388
        %v404 = vpack.c.b16 %v391, %v390
        %v405 = vpack.c.b16 %v393, %v392
        %v406 = vpack.c.b16 %v395, %v394
        %v407 = vpack.c.b16 %v397, %v396
        %v408 = vpack.c.b16 %v399, %v398
        %v409 = vpack.c.b16 %v401, %v400
        %vm410 = vcmask 64512
        %v412 = vsel %vm410, %v402, 0
        %v415 = vsel %vm410, %v403, 0
        %v418 = vsel %vm410, %v404, 0
        %v421 = vsel %vm410, %v405, 0
        %v424 = vsel %vm410, %v406, 0
        %v427 = vsel %vm410, %v407, 0
        %v430 = vsel %vm410, %v408, 0
        %v433 = vsel %vm410, %v409, 0
        %vm435 = vcmask 1043456
        %v437 = vsel %vm435, %v352, 0
        %439 = vmatprep.subr.bf16.mxu0 0
        %440 = vmatpush1.bf16.msra.mxu0 %v437
        %441 = vmatprep.subr.bf16.mxu0 0
        %442 = vmatpush1.bf16.msra.mxu0 0
        %443 = vmatprep.subr.bf16.mxu0 0
        %444 = vmatpush1.bf16.msra.mxu0 0
        %445 = vmatprep.subr.bf16.mxu0 0
        %446 = vmatpush1.bf16.msra.mxu0 0
        %447 = vmatprep.subr.bf16.mxu0 0
        %448 = vmatpush1.bf16.msra.mxu0 0
        %449 = vmatprep.subr.bf16.mxu0 0
        %450 = vmatpush1.bf16.msra.mxu0 0
        %451 = vmatprep.subr.bf16.mxu0 0
        %452 = vmatpush1.bf16.msra.mxu0 0
        %453 = vmatprep.subr.bf16.mxu0 0
        %454 = vmatpush1.bf16.msra.mxu0 0
        %455 = vmatprep.subr.bf16.mxu0 0
        %456 = vmatpush1.bf16.msra.mxu0 0
        %457 = vmatprep.subr.bf16.mxu0 0
        %458 = vmatpush1.bf16.msra.mxu0 0
        %459 = vmatprep.subr.bf16.mxu0 0
        %460 = vmatpush1.bf16.msra.mxu0 0
        %461 = vmatprep.subr.bf16.mxu0 0
        %462 = vmatpush1.bf16.msra.mxu0 0
        %463 = vmatprep.subr.bf16.mxu0 0
        %464 = vmatpush1.bf16.msra.mxu0 0
        %465 = vmatprep.subr.bf16.mxu0 0
        %466 = vmatpush1.bf16.msra.mxu0 0
        %467 = vmatprep.subr.bf16.mxu0 0
        %468 = vmatpush1.bf16.msra.mxu0 0
        %469 = vmatprep.subr.bf16.mxu0 0
        %470 = vmatpush1.bf16.msra.mxu0 0
        %471 = vmatprep.mubr.bf16.mxu0 0
        %472 = vmatmul.mubr.bf16.gmra.mrb[0].mxu0 %v412
        %v473 = vpop.f32.mrb[0].mxu0
        %v474 = vadd.f32 0.0, %v473
        %v475 = vpop.f32.mrb[0].mxu0
        %v476 = vpop.f32.mrb[0].mxu0
        %v477 = vadd.f32 0.0, %v476
        %v478 = vpop.f32.mrb[0].mxu0
        %479 = vmatprep.mubr.bf16.mxu0 0
        %480 = vmatmul.mubr.bf16.gmra.mrb[0].mxu0 %v415
        %v481 = vpop.f32.mrb[0].mxu0
        %v482 = vadd.f32 0.0, %v481
        %v483 = vpop.f32.mrb[0].mxu0
        %v484 = vpop.f32.mrb[0].mxu0
        %v485 = vadd.f32 0.0, %v484
        %v486 = vpop.f32.mrb[0].mxu0
        %487 = vmatprep.mubr.bf16.mxu0 0
        %488 = vmatmul.mubr.bf16.gmra.mrb[0].mxu0 %v418
        %v489 = vpop.f32.mrb[0].mxu0
        %v490 = vadd.f32 0.0, %v489
        %v491 = vpop.f32.mrb[0].mxu0
        %v492 = vpop.f32.mrb[0].mxu0
        %v493 = vadd.f32 0.0, %v492
        %v494 = vpop.f32.mrb[0].mxu0
        %495 = vmatprep.mubr.bf16.mxu0 0
        %496 = vmatmul.mubr.bf16.gmra.mrb[0].mxu0 %v421
        %v497 = vpop.f32.mrb[0].mxu0
        %v498 = vadd.f32 0.0, %v497
        %v499 = vpop.f32.mrb[0].mxu0
        %v500 = vpop.f32.mrb[0].mxu0
        %v501 = vadd.f32 0.0, %v500
        %v502 = vpop.f32.mrb[0].mxu0
        %503 = vmatprep.mubr.bf16.mxu0 0
        %504 = vmatmul.mubr.bf16.gmra.mrb[0].mxu0 %v424
        %v505 = vpop.f32.mrb[0].mxu0
        %v506 = vadd.f32 0.0, %v505
        %v507 = vpop.f32.mrb[0].mxu0
        %v508 = vpop.f32.mrb[0].mxu0
        %v509 = vadd.f32 0.0, %v508
        %v510 = vpop.f32.mrb[0].mxu0
        %511 = vmatprep.mubr.bf16.mxu0 0
        %512 = vmatmul.mubr.bf16.gmra.mrb[0].mxu0 %v427
        %v513 = vpop.f32.mrb[0].mxu0
        %v514 = vadd.f32 0.0, %v513
        %v515 = vpop.f32.mrb[0].mxu0
        %v516 = vpop.f32.mrb[0].mxu0
        %v517 = vadd.f32 0.0, %v516
        %v518 = vpop.f32.mrb[0].mxu0
        %519 = vmatprep.mubr.bf16.mxu0 0
        %520 = vmatmul.mubr.bf16.gmra.mrb[0].mxu0 %v430
        %v521 = vpop.f32.mrb[0].mxu0
        %v522 = vadd.f32 0.0, %v521
        %v523 = vpop.f32.mrb[0].mxu0
        %v524 = vpop.f32.mrb[0].mxu0
        %v525 = vadd.f32 0.0, %v524
        %v526 = vpop.f32.mrb[0].mxu0
        %527 = vmatprep.mubr.bf16.mxu0 0
        %528 = vmatmul.mubr.bf16.gmra.mrb[0].mxu0 %v433
        %v529 = vpop.f32.mrb[0].mxu0
        %v530 = vadd.f32 0.0, %v529
        %v531 = vpop.f32.mrb[0].mxu0
        %v532 = vpop.f32.mrb[0].mxu0
        %v533 = vadd.f32 0.0, %v532
        %v534 = vpop.f32.mrb[0].mxu0
        %535 = vdwg.mxu0
        %v536 = vpack.c.bf16 %v477, %v474
        %v537 = vpack.c.bf16 %v485, %v482
        %v538 = vpack.c.bf16 %v493, %v490
        %v539 = vpack.c.bf16 %v501, %v498
        %v540 = vpack.c.bf16 %v509, %v506
        %v541 = vpack.c.bf16 %v517, %v514
        %v542 = vpack.c.bf16 %v525, %v522
        %v543 = vpack.c.bf16 %v533, %v530
        %v544 = vld [vmem:[%s4] sm:$0xf]
        %v545 = vld [vmem:[%s4 + $0x4] sm:$0xf]
        %v546 = vld [vmem:[%s4 + $0x8] sm:$0xf]
        %v547 = vld [vmem:[%s4 + $0xc] sm:$0xf]
        %v548 = vld [vmem:[%s4 + $0x10] sm:$0xf]
        %v549 = vld [vmem:[%s4 + $0x14] sm:$0xf]
        %v550 = vld [vmem:[%s4 + $0x18] sm:$0xf]
        %v551 = vld [vmem:[%s4 + $0x1c] sm:$0xf]
        %v552 = vld [vmem:[%s4 + $0x20] sm:$0xf]
        %v553 = vld [vmem:[%s4 + $0x24] sm:$0xf]
        %v554 = vld [vmem:[%s4 + $0x28] sm:$0xf]
        %v555 = vld [vmem:[%s4 + $0x2c] sm:$0xf]
        %v556 = vld [vmem:[%s4 + $0x30] sm:$0xf]
        %v557 = vld [vmem:[%s4 + $0x34] sm:$0xf]
        %v558 = vld [vmem:[%s4 + $0x38] sm:$0xf]
        %v559 = vld [vmem:[%s4 + $0x3c] sm:$0xf]
        %v576 = vunpack.c.l.b16 %v544
        %v577 = vunpack.c.l.b16 %v545
        %v578 = vunpack.c.l.b16 %v546
        %v579 = vunpack.c.l.b16 %v547
        %v580 = vunpack.c.l.b16 %v548
        %v581 = vunpack.c.l.b16 %v549
        %v582 = vunpack.c.l.b16 %v550
        %v583 = vunpack.c.l.b16 %v551
        %v584 = vunpack.c.l.b16 %v552
        %v585 = vunpack.c.l.b16 %v553
        %v586 = vunpack.c.l.b16 %v554
        %v587 = vunpack.c.l.b16 %v555
        %v588 = vunpack.c.l.b16 %v556
        %v589 = vunpack.c.l.b16 %v557
        %v590 = vunpack.c.l.b16 %v558
        %v591 = vunpack.c.l.b16 %v559
        %v592 = vpack.c.b16 %v577, %v576
        %v593 = vpack.c.b16 %v579, %v578
        %v594 = vpack.c.b16 %v581, %v580
        %v595 = vpack.c.b16 %v583, %v582
        %v596 = vpack.c.b16 %v585, %v584
        %v597 = vpack.c.b16 %v587, %v586
        %v598 = vpack.c.b16 %v589, %v588
        %v599 = vpack.c.b16 %v591, %v590
        %v601 = vsel %vm410, %v592, 0
        %v604 = vsel %vm410, %v593, 0
        %v607 = vsel %vm410, %v594, 0
        %v610 = vsel %vm410, %v595, 0
        %v613 = vsel %vm410, %v596, 0
        %v616 = vsel %vm410, %v597, 0
        %v619 = vsel %vm410, %v598, 0
        %v622 = vsel %vm410, %v599, 0
        %v625 = vsel %vm435, %v353, 0
        %627 = vmatprep.subr.bf16.mxu0 0
        %628 = vmatpush1.bf16.msra.mxu0 %v625
        %629 = vmatprep.subr.bf16.mxu0 0
        %630 = vmatpush1.bf16.msra.mxu0 0
        %631 = vmatprep.subr.bf16.mxu0 0
        %632 = vmatpush1.bf16.msra.mxu0 0
        %633 = vmatprep.subr.bf16.mxu0 0
        %634 = vmatpush1.bf16.msra.mxu0 0
        %635 = vmatprep.subr.bf16.mxu0 0
        %636 = vmatpush1.bf16.msra.mxu0 0
        %637 = vmatprep.subr.bf16.mxu0 0
        %638 = vmatpush1.bf16.msra.mxu0 0
        %639 = vmatprep.subr.bf16.mxu0 0
        %640 = vmatpush1.bf16.msra.mxu0 0
        %641 = vmatprep.subr.bf16.mxu0 0
        %642 = vmatpush1.bf16.msra.mxu0 0
        %643 = vmatprep.subr.bf16.mxu0 0
        %644 = vmatpush1.bf16.msra.mxu0 0
        %645 = vmatprep.subr.bf16.mxu0 0
        %646 = vmatpush1.bf16.msra.mxu0 0
        %647 = vmatprep.subr.bf16.mxu0 0
        %648 = vmatpush1.bf16.msra.mxu0 0
        %649 = vmatprep.subr.bf16.mxu0 0
        %650 = vmatpush1.bf16.msra.mxu0 0
        %651 = vmatprep.subr.bf16.mxu0 0
        %652 = vmatpush1.bf16.msra.mxu0 0
        %653 = vmatprep.subr.bf16.mxu0 0
        %654 = vmatpush1.bf16.msra.mxu0 0
        %655 = vmatprep.subr.bf16.mxu0 0
        %656 = vmatpush1.bf16.msra.mxu0 0
        %657 = vmatprep.subr.bf16.mxu0 0
        %658 = vmatpush1.bf16.msra.mxu0 0
        %659 = vmatprep.mubr.bf16.mxu0 0
        %660 = vmatmul.mubr.bf16.gmra.mrb[0].mxu0 %v601
        %v661 = vpop.f32.mrb[0].mxu0
        %v662 = vadd.f32 0.0, %v661
        %v663 = vpop.f32.mrb[0].mxu0
        %v664 = vpop.f32.mrb[0].mxu0
        %v665 = vadd.f32 0.0, %v664
        %v666 = vpop.f32.mrb[0].mxu0
        %667 = vmatprep.mubr.bf16.mxu0 0
        %668 = vmatmul.mubr.bf16.gmra.mrb[0].mxu0 %v604
        %v669 = vpop.f32.mrb[0].mxu0
        %v670 = vadd.f32 0.0, %v669
        %v671 = vpop.f32.mrb[0].mxu0
        %v672 = vpop.f32.mrb[0].mxu0
        %v673 = vadd.f32 0.0, %v672
        %v674 = vpop.f32.mrb[0].mxu0
        %675 = vmatprep.mubr.bf16.mxu0 0
        %676 = vmatmul.mubr.bf16.gmra.mrb[0].mxu0 %v607
        %v677 = vpop.f32.mrb[0].mxu0
        %v678 = vadd.f32 0.0, %v677
        %v679 = vpop.f32.mrb[0].mxu0
        %v680 = vpop.f32.mrb[0].mxu0
        %v681 = vadd.f32 0.0, %v680
        %v682 = vpop.f32.mrb[0].mxu0
        %683 = vmatprep.mubr.bf16.mxu0 0
        %684 = vmatmul.mubr.bf16.gmra.mrb[0].mxu0 %v610
        %v685 = vpop.f32.mrb[0].mxu0
        %v686 = vadd.f32 0.0, %v685
        %v687 = vpop.f32.mrb[0].mxu0
        %v688 = vpop.f32.mrb[0].mxu0
        %v689 = vadd.f32 0.0, %v688
        %v690 = vpop.f32.mrb[0].mxu0
        %691 = vmatprep.mubr.bf16.mxu0 0
        %692 = vmatmul.mubr.bf16.gmra.mrb[0].mxu0 %v613
        %v693 = vpop.f32.mrb[0].mxu0
        %v694 = vadd.f32 0.0, %v693
        %v695 = vpop.f32.mrb[0].mxu0
        %v696 = vpop.f32.mrb[0].mxu0
        %v697 = vadd.f32 0.0, %v696
        %v698 = vpop.f32.mrb[0].mxu0
        %699 = vmatprep.mubr.bf16.mxu0 0
        %700 = vmatmul.mubr.bf16.gmra.mrb[0].mxu0 %v616
        %v701 = vpop.f32.mrb[0].mxu0
        %v702 = vadd.f32 0.0, %v701
        %v703 = vpop.f32.mrb[0].mxu0
        %v704 = vpop.f32.mrb[0].mxu0
        %v705 = vadd.f32 0.0, %v704
        %v706 = vpop.f32.mrb[0].mxu0
        %707 = vmatprep.mubr.bf16.mxu0 0
        %708 = vmatmul.mubr.bf16.gmra.mrb[0].mxu0 %v619
        %v709 = vpop.f32.mrb[0].mxu0
        %v710 = vadd.f32 0.0, %v709
        %v711 = vpop.f32.mrb[0].mxu0
        %v712 = vpop.f32.mrb[0].mxu0
        %v713 = vadd.f32 0.0, %v712
        %v714 = vpop.f32.mrb[0].mxu0
        %715 = vmatprep.mubr.bf16.mxu0 0
        %716 = vmatmul.mubr.bf16.gmra.mrb[0].mxu0 %v622
        %v717 = vpop.f32.mrb[0].mxu0
        %v718 = vadd.f32 0.0, %v717
        %v719 = vpop.f32.mrb[0].mxu0
        %v720 = vpop.f32.mrb[0].mxu0
        %v721 = vadd.f32 0.0, %v720
        %v722 = vpop.f32.mrb[0].mxu0
        %723 = vdwg.mxu0
        %v724 = vpack.c.bf16 %v665, %v662
        %v725 = vpack.c.bf16 %v673, %v670
        %v726 = vpack.c.bf16 %v681, %v678
        %v727 = vpack.c.bf16 %v689, %v686
        %v728 = vpack.c.bf16 %v697, %v694
        %v729 = vpack.c.bf16 %v705, %v702
        %v730 = vpack.c.bf16 %v713, %v710
        %v731 = vpack.c.bf16 %v721, %v718
        %732 = vmatprep.subr.bf16.mxu0 0
        %733 = vmatpush1.bf16.xpose.msra.mxu0 %v536
        %734 = vmatprep.subr.bf16.mxu0 0
        %735 = vmatpush1.bf16.xpose.msra.mxu0 %v537
        %736 = vmatprep.subr.bf16.mxu0 0
        %737 = vmatpush1.bf16.xpose.msra.mxu0 %v538
        %738 = vmatprep.subr.bf16.mxu0 0
        %739 = vmatpush1.bf16.xpose.msra.mxu0 %v539
        %740 = vmatprep.subr.bf16.mxu0 0
        %741 = vmatpush1.bf16.xpose.msra.mxu0 %v540
        %742 = vmatprep.subr.bf16.mxu0 0
        %743 = vmatpush1.bf16.xpose.msra.mxu0 %v541
        %744 = vmatprep.subr.bf16.mxu0 0
        %745 = vmatpush1.bf16.xpose.msra.mxu0 %v542
        %746 = vmatprep.subr.bf16.mxu0 0
        %747 = vmatpush1.bf16.xpose.msra.mxu0 %v543
        %748 = vmatprep.subr.bf16.mxu0 0
        %749 = vmatpush1.bf16.xpose.msra.mxu0 0
        %750 = vmatprep.subr.bf16.mxu0 0
        %751 = vmatpush1.bf16.xpose.msra.mxu0 0
        %752 = vmatprep.subr.bf16.mxu0 0
        %753 = vmatpush1.bf16.xpose.msra.mxu0 0
        %754 = vmatprep.subr.bf16.mxu0 0
        %755 = vmatpush1.bf16.xpose.msra.mxu0 0
        %756 = vmatprep.subr.bf16.mxu0 0
        %757 = vmatpush1.bf16.xpose.msra.mxu0 0
        %758 = vmatprep.subr.bf16.mxu0 0
        %759 = vmatpush1.bf16.xpose.msra.mxu0 0
        %760 = vmatprep.subr.bf16.mxu0 0
        %761 = vmatpush1.bf16.xpose.msra.mxu0 0
        %762 = vmatprep.subr.bf16.mxu0 0
        %763 = vmatpush1.bf16.xpose.msra.mxu0 0
        %764 = vmatprep.mubr.bf16.mxu0 0
        %765 = vmatmul.mubr.bf16.gmra.mrb[0].mxu0 %v351
        %v766 = vpop.f32.mrb[0].mxu0
        %v767 = vadd.f32 0.0, %v766
        %v768 = vpop.f32.mrb[0].mxu0
        %v769 = vpop.f32.mrb[0].mxu0
        %v770 = vpop.f32.mrb[0].mxu0
        %771 = vdwg.mxu0
        %v772 = vmul.f32 %v767, 0.17677669
        %v773 = vsel %vm350, %v772, -1e+30
        %774 = vmax.xlane.f32.xlu0 %v773
        %v775 = vpop.xlane.xlu0 %774
        %v776 = vsub.f32 %v773, %v775
        %v777 = vmul.f32 %v776, 1.442695
        %v778 = vpow.pop %v777
        %779 = vadd.xlane.f32.xlu0 %v778
        %v780 = vpop.xlane.xlu0 %779
        %v781 = vrcp.pop %v780
        %v782 = vmul.f32 %v778, %v781
        %v783 = vpack.c.bf16 %v782, %v782
        %784 = vmatprep.subr.bf16.mxu0 0
        %785 = vmatpush1.bf16.msra.mxu0 %v724
        %786 = vmatprep.subr.bf16.mxu0 0
        %787 = vmatpush1.bf16.msra.mxu0 %v725
        %788 = vmatprep.subr.bf16.mxu0 0
        %789 = vmatpush1.bf16.msra.mxu0 %v726
        %790 = vmatprep.subr.bf16.mxu0 0
        %791 = vmatpush1.bf16.msra.mxu0 %v727
        %792 = vmatprep.subr.bf16.mxu0 0
        %793 = vmatpush1.bf16.msra.mxu0 %v728
        %794 = vmatprep.subr.bf16.mxu0 0
        %795 = vmatpush1.bf16.msra.mxu0 %v729
        %796 = vmatprep.subr.bf16.mxu0 0
        %797 = vmatpush1.bf16.msra.mxu0 %v730
        %798 = vmatprep.subr.bf16.mxu0 0
        %799 = vmatpush1.bf16.msra.mxu0 %v731
        %800 = vmatprep.subr.bf16.mxu0 0
        %801 = vmatpush1.bf16.msra.mxu0 0
        %802 = vmatprep.subr.bf16.mxu0 0
        %803 = vmatpush1.bf16.msra.mxu0 0
        %804 = vmatprep.subr.bf16.mxu0 0
        %805 = vmatpush1.bf16.msra.mxu0 0
        %806 = vmatprep.subr.bf16.mxu0 0
        %807 = vmatpush1.bf16.msra.mxu0 0
        %808 = vmatprep.subr.bf16.mxu0 0
        %809 = vmatpush1.bf16.msra.mxu0 0
        %810 = vmatprep.subr.bf16.mxu0 0
        %811 = vmatpush1.bf16.msra.mxu0 0
        %812 = vmatprep.subr.bf16.mxu0 0
        %813 = vmatpush1.bf16.msra.mxu0 0
        %814 = vmatprep.subr.bf16.mxu0 0
        %815 = vmatpush1.bf16.msra.mxu0 0
        %816 = vmatprep.mubr.bf16.mxu0 0
        %817 = vmatmul.mubr.bf16.gmra.mrb[0].mxu0 %v783
        %v818 = vpop.f32.mrb[0].mxu0
        %v819 = vadd.f32 0.0, %v818
        %v820 = vpop.f32.mrb[0].mxu0
        %v821 = vpop.f32.mrb[0].mxu0
        %v822 = vpop.f32.mrb[0].mxu0
        %823 = vdwg.mxu0
        %v824 = vpack.c.bf16 %v819, %v819
        %v825 = vld [vmem:[%s2] sm:$0xf]
        %v826 = vld [vmem:[%s2 + $0x4] sm:$0xf]
        %v827 = vld [vmem:[%s2 + $0x8] sm:$0xf]
        %v828 = vld [vmem:[%s2 + $0xc] sm:$0xf]
        %v829 = vld [vmem:[%s2 + $0x10] sm:$0xf]
        %v830 = vld [vmem:[%s2 + $0x14] sm:$0xf]
        %v831 = vld [vmem:[%s2 + $0x18] sm:$0xf]
        %v832 = vld [vmem:[%s2 + $0x1c] sm:$0xf]
        %v833 = vld [vmem:[%s2 + $0x20] sm:$0xf]
        %v834 = vld [vmem:[%s2 + $0x24] sm:$0xf]
        %v835 = vld [vmem:[%s2 + $0x28] sm:$0xf]
        %v836 = vld [vmem:[%s2 + $0x2c] sm:$0xf]
        %v837 = vld [vmem:[%s2 + $0x30] sm:$0xf]
        %v838 = vld [vmem:[%s2 + $0x34] sm:$0xf]
        %v839 = vld [vmem:[%s2 + $0x38] sm:$0xf]
        %v840 = vld [vmem:[%s2 + $0x3c] sm:$0xf]
        %v857 = vunpack.c.l.b16 %v825
        %v858 = vunpack.c.l.b16 %v826
        %v859 = vunpack.c.l.b16 %v827
        %v860 = vunpack.c.l.b16 %v828
        %v861 = vunpack.c.l.b16 %v829
        %v862 = vunpack.c.l.b16 %v830
        %v863 = vunpack.c.l.b16 %v831
        %v864 = vunpack.c.l.b16 %v832
        %v865 = vunpack.c.l.b16 %v833
        %v866 = vunpack.c.l.b16 %v834
        %v867 = vunpack.c.l.b16 %v835
        %v868 = vunpack.c.l.b16 %v836
        %v869 = vunpack.c.l.b16 %v837
        %v870 = vunpack.c.l.b16 %v838
        %v871 = vunpack.c.l.b16 %v839
        %v872 = vunpack.c.l.b16 %v840
        %v873 = vpack.c.b16 %v858, %v857
        %v874 = vpack.c.b16 %v860, %v859
        %v875 = vpack.c.b16 %v862, %v861
        %v876 = vpack.c.b16 %v864, %v863
        %v877 = vpack.c.b16 %v866, %v865
        %v878 = vpack.c.b16 %v868, %v867
        %v879 = vpack.c.b16 %v870, %v869
        %v880 = vpack.c.b16 %v872, %v871
        %889 = vmatprep.subr.bf16.mxu0 0
        %890 = vmatpush1.bf16.msra.mxu0 %v873
        %891 = vmatprep.subr.bf16.mxu0 0
        %892 = vmatpush1.bf16.msra.mxu0 %v874
        %893 = vmatprep.subr.bf16.mxu0 0
        %894 = vmatpush1.bf16.msra.mxu0 %v875
        %895 = vmatprep.subr.bf16.mxu0 0
        %896 = vmatpush1.bf16.msra.mxu0 %v876
        %897 = vmatprep.subr.bf16.mxu0 0
        %898 = vmatpush1.bf16.msra.mxu0 %v877
        %899 = vmatprep.subr.bf16.mxu0 0
        %900 = vmatpush1.bf16.msra.mxu0 %v878
        %901 = vmatprep.subr.bf16.mxu0 0
        %902 = vmatpush1.bf16.msra.mxu0 %v879
        %903 = vmatprep.subr.bf16.mxu0 0
        %904 = vmatpush1.bf16.msra.mxu0 %v880
        %905 = vmatprep.subr.bf16.mxu0 0
        %906 = vmatpush1.bf16.msra.mxu0 0
        %907 = vmatprep.subr.bf16.mxu0 0
        %908 = vmatpush1.bf16.msra.mxu0 0
        %909 = vmatprep.subr.bf16.mxu0 0
        %910 = vmatpush1.bf16.msra.mxu0 0
        %911 = vmatprep.subr.bf16.mxu0 0
        %912 = vmatpush1.bf16.msra.mxu0 0
        %913 = vmatprep.subr.bf16.mxu0 0
        %914 = vmatpush1.bf16.msra.mxu0 0
        %915 = vmatprep.subr.bf16.mxu0 0
        %916 = vmatpush1.bf16.msra.mxu0 0
        %917 = vmatprep.subr.bf16.mxu0 0
        %918 = vmatpush1.bf16.msra.mxu0 0
        %919 = vmatprep.subr.bf16.mxu0 0
        %920 = vmatpush1.bf16.msra.mxu0 0
        %921 = vmatprep.mubr.bf16.mxu0 0
        %922 = vmatmul.mubr.bf16.gmra.mrb[0].mxu0 %v824
        %v923 = vpop.f32.mrb[0].mxu0
        %v924 = vadd.f32 0.0, %v923
        %v925 = vpop.f32.mrb[0].mxu0
        %v926 = vpop.f32.mrb[0].mxu0
        %v927 = vpop.f32.mrb[0].mxu0
        %928 = vdwg.mxu0
        %v929 = vpack.c.bf16 %v924, %v924
        %930 = vst [vmem:[%s215] sm:$0xf] %v929
        %s931 = sand.u32 %s137, 1
        %s932 = scalar_lea.sflag [#allocation3], %s931
        %s933 = sand.u32 %s137, 1
        %s934 = smul.addr %s933, 4
        %s935 = scalar_lea.vmem [#allocation2], %s934
        // Predicated region
        $region41: #{tpu_custom_call.1} parent=39 // pred_check
          %p936 = pneg %p147
        $region42: #{tpu_custom_call.1} parent=39 // pred_check_branch
          %938 = sbr.rel (%p936) target = $region44
        $region43: #{tpu_custom_call.1} parent=39 // pred_region
          %s940 = ssub.s32 64, 64
          %941 = vsyncadd %s932, %s940
          %s942 = smul.addr %s19, 64
          %s943 = scalar_lea.hbm %s5, %s942
          %s945 = sshll.u32 %s935, 4
          %s946 = int_to_ptr.vmem [resolvable:$true] %s945
          %948 = dma.vmem_to_hbm [thread:$0]  %s946, 64, %s943, %s932
        $region44: #{tpu_custom_call.1} parent=39 // pred_fallthru
          _
      $region40: #{tpu_custom_call.1} parent=5 // pred_fallthru
        _
      %p949 = scmp.le.s32.totalorder 2, %s14
      // Predicated region
      $region45: #{tpu_custom_call.1} parent=5 // pred_check
        %p950 = pneg %p949
      $region46: #{tpu_custom_call.1} parent=5 // pred_check_branch
        %952 = sbr.rel (%p950) target = $region48
      $region47: #{tpu_custom_call.1} parent=5 // pred_region
        %s953 = ssub.s32 %s14, 2
        // Predicated region
        $region49: #{tpu_custom_call.1} parent=47 // pred_check
          %p954 = pneg %p153
        $region50: #{tpu_custom_call.1} parent=47 // pred_check_branch
          %956 = sbr.rel (%p954) target = $region52
        $region51: #{tpu_custom_call.1} parent=47 // pred_region
          %s957 = sand.u32 %s138, 1
          %s958 = scalar_lea.sflag [#allocation3], %s957
          %s959 = sand.u32 %s138, 1
          %s960 = smul.addr %s959, 4
          %s961 = scalar_lea.vmem [#allocation2], %s960
          %962 = dma.done %s958, 64
        $region52: #{tpu_custom_call.1} parent=47 // pred_fallthru
          _
      $region48: #{tpu_custom_call.1} parent=5 // pred_fallthru
        _
    $region6: #{tpu_custom_call.1} parent=1 // loop_footer
      %s18 = sadd.s32 1, %s14
    $region7: #{tpu_custom_call.1} parent=1 // loop_footer_branch
      %13 = sbr.rel target = $region3
    $region8: #{tpu_custom_call.1} parent=1 // loop_exit
      _
    %963 = vsyncpa [#allocation3], 1
    %s964 = scalar_lea.sflag [#allocation3], 1
    %965 = vsyncpa %s964, 1

</llo_original>
